<compile_context>
chip_gen: v5e
topology: v5e:2x2
jax: 0.10.0
libtpu: 0.0.40
codegen_flags: <defaults>
</compile_context>

<pallas_src>
from functools import partial

import jax
import jax.numpy as jnp
from jax.experimental import pallas as pl
from jax.experimental.pallas import tpu as pltpu

STATE_SIZE = 4      # CartPole-v1 observation dim
ACTION_SIZE = 2     # CartPole-v1 action dim
HIDDEN_SIZE = 64
HPAD = 128          # hidden/action/state dims padded to one full lane width
BATCH = 256         # replay-buffer sized batch

MAX_TILE_B = 4096       # VMEM cap (v7x: 64 MiB physical / 32 MiB scoped default)
SPLIT_THRESHOLD = 2048  # below this, one grid step; above, split for v7x megacore


# ---------------------------------------------------------------------------
# Kernel
# ---------------------------------------------------------------------------
def dqn_mlp_kernel(x_ref, pslab_ref, wslab_ref, out_ref, *, hpad):
    # x:      (TB, hpad)        f32   state in lanes [0, state_size), rest zero
    # pslab:  (8, hpad)         f32   row 0 = b1, row 1 = b2, row 2 = b3 (zero-padded)
    # wslab:  (3*hpad, hpad)    bf16  [w1_pad ; w2_pad ; w3_pad]
    # out:    (TB, hpad)        bf16  q in lanes [0, action_size)
    x = x_ref[...].astype(jnp.bfloat16)          # padded lanes are exactly zero
    p = pslab_ref[...]                           # (8, hpad) f32 — one vreg
    b1 = p[0:1, :]
    b2 = p[1:2, :]
    b3 = p[2:3, :]

    w1 = wslab_ref[0 * hpad:1 * hpad, :]         # (hpad, hpad) bf16
    w2 = wslab_ref[1 * hpad:2 * hpad, :]
    w3 = wslab_ref[2 * hpad:3 * hpad, :]

    # All three layers on the MXU (bf16 operands, f32 accumulation);
    # bias add + ReLU stay f32 (v5e-safe epilogue).
    h1 = jnp.maximum(
        jnp.dot(x, w1, preferred_element_type=jnp.float32) + b1, 0.0)
    h2 = jnp.maximum(
        jnp.dot(h1.astype(jnp.bfloat16), w2,
                preferred_element_type=jnp.float32) + b2, 0.0)
    q = jnp.dot(h2.astype(jnp.bfloat16), w3,
                preferred_element_type=jnp.float32) + b3

    out_ref[...] = q.astype(out_ref.dtype)       # lane-dense, unmasked store


# ---------------------------------------------------------------------------
# Param packing (done once; reuse the slabs across calls)
# ---------------------------------------------------------------------------
def pack_params(params, hpad=HPAD):
    w1, b1 = params["w1"], params["b1"]          # (S, H), (1, H)
    w2, b2 = params["w2"], params["b2"]          # (H, H), (1, H)
    w3, b3 = params["w3"], params["b3"]          # (H, A), (1, A)
    s, h = w1.shape
    a = w3.shape[1]
    assert s <= hpad and h <= hpad and a <= hpad

    # f32 bias slab: fits in a single (8, 128) vreg.
    pslab = jnp.zeros((8, hpad), jnp.float32)
    pslab = pslab.at[0, 0:h].set(b1[0])
    pslab = pslab.at[1, 0:h].set(b2[0])
    pslab = pslab.at[2, 0:a].set(b3[0])

    # bf16 MXU slab: w1, w2, w3 zero-padded to 128x128 blocks, stacked.
    wslab = jnp.zeros((3 * hpad, hpad), jnp.float32)
    wslab = wslab.at[0:s, 0:h].set(w1)
    wslab = wslab.at[hpad:hpad + h, 0:h].set(w2)
    wslab = wslab.at[2 * hpad:2 * hpad + h, 0:a].set(w3)
    return pslab, wslab.astype(jnp.bfloat16)


# ---------------------------------------------------------------------------
# Forward wrapper
# ---------------------------------------------------------------------------
def _pick_tile_b(batch):
    """One grid step unless the batch is big enough to amortize a second
    TensorCore launch on v7x; cap the tile so the VMEM footprint stays bounded."""
    if batch <= SPLIT_THRESHOLD:
        tile = batch
    else:
        tile = min(pl.cdiv(batch, 2), MAX_TILE_B)
    return max(16, ((tile + 15) // 16) * 16)     # bf16 sublane tiling = 16 rows


def dq_network_forward(state, pslab, wslab, action_size=ACTION_SIZE):
    """state: (B, state_size) f32; pslab/wslab: packed params from pack_params.
    Returns f32 Q-values of shape (B, action_size), matching the nn.Module API."""
    b, s = state.shape
    hpad = pslab.shape[1]

    tile_b = _pick_tile_b(b)
    n_tiles = pl.cdiv(b, tile_b)
    b_pad = n_tiles * tile_b

    # Single pad op: batch rows -> b_pad, state lanes -> hpad (lane-dense input).
    x = jnp.pad(state, ((0, b_pad - b), (0, hpad - s)))

    out = pl.pallas_call(
        partial(dqn_mlp_kernel, hpad=hpad),
        out_shape=jax.ShapeDtypeStruct((b_pad, hpad), jnp.bfloat16),
        grid=(n_tiles,),
        in_specs=[
            pl.BlockSpec((tile_b, hpad), lambda i: (i, 0)),   # x: tiled over batch
            pl.BlockSpec(pslab.shape, lambda i: (0, 0)),      # resident bias slab
            pl.BlockSpec(wslab.shape, lambda i: (0, 0)),      # resident weight slab
        ],
        out_specs=pl.BlockSpec((tile_b, hpad), lambda i: (i, 0)),
        compiler_params=pltpu.CompilerParams(
            dimension_semantics=("parallel",)),               # megacore on v7x
    )(x, pslab, wslab)

    # Preserve module interface: f32 (B, action_size) Q-values.
    return out[:b, :action_size].astype(jnp.float32)


# ---------------------------------------------------------------------------
# Init + references
# ---------------------------------------------------------------------------
def init_params(key, state_size=STATE_SIZE, action_size=ACTION_SIZE,
                hidden_size=HIDDEN_SIZE):
    """PyTorch nn.Linear default init (U[-1/sqrt(fan_in), +]); (in, out) layout."""
    ks = jax.random.split(key, 6)

    def linear(kw, kb, fan_in, fan_out):
        bound = 1.0 / float(fan_in) ** 0.5
        w = jax.random.uniform(kw, (fan_in, fan_out), jnp.float32, -bound, bound)
        b = jax.random.uniform(kb, (1, fan_out), jnp.float32, -bound, bound)
        return w, b

    w1, b1 = linear(ks[0], ks[1], state_size, hidden_size)
    w2, b2 = linear(ks[2], ks[3], hidden_size, hidden_size)
    w3, b3 = linear(ks[4], ks[5], hidden_size, action_size)
    return {"w1": w1, "b1": b1, "w2": w2, "b2": b2, "w3": w3, "b3": b3}


def reference_forward_f32(state, params):
    h1 = jnp.maximum(state @ params["w1"] + params["b1"], 0.0)
    h2 = jnp.maximum(h1 @ params["w2"] + params["b2"], 0.0)
    return h2 @ params["w3"] + params["b3"]


def reference_forward_matched(state, params):
    """Pure-JAX reference with the kernel's bf16-weight / f32-accum / bf16-out policy."""
    x = state.astype(jnp.bfloat16)
    h1 = jnp.maximum(
        jnp.dot(x, params["w1"].astype(jnp.bfloat16),
                preferred_element_type=jnp.float32) + params["b1"], 0.0)
    h2 = jnp.maximum(
        jnp.dot(h1.astype(jnp.bfloat16), params["w2"].astype(jnp.bfloat16),
                preferred_element_type=jnp.float32) + params["b2"], 0.0)
    q = jnp.dot(h2.astype(jnp.bfloat16), params["w3"].astype(jnp.bfloat16),
                preferred_element_type=jnp.float32) + params["b3"]
    return q.astype(jnp.bfloat16).astype(jnp.float32)


# ---------------------------------------------------------------------------
if __name__ == "__main__":
    key = jax.random.PRNGKey(0)
    k_params, k_state = jax.random.split(key)

    params = init_params(k_params)
    pslab, wslab = pack_params(params)          # pack once, reuse every call
    state = jax.random.normal(k_state, (BATCH, STATE_SIZE), jnp.float32)

    # Replay-batch sized forward (grid=(1,)).
    q_vals = jax.block_until_ready(dq_network_forward(state, pslab, wslab))
    assert q_vals.shape == (BATCH, ACTION_SIZE)
    assert q_vals.dtype == jnp.float32

    ref_matched = reference_forward_matched(state, params)
    ref_f32 = reference_forward_f32(state, params)
    assert jnp.allclose(q_vals, ref_matched, atol=2e-3, rtol=2e-3), \
        "mismatch vs precision-matched reference"
    assert jnp.allclose(q_vals, ref_f32, atol=5e-2), \
        "mismatch vs f32 reference beyond bf16 tolerance"

    # Acting-loop sized forward (B=1) exercises the batch-pad path.
    q1 = jax.block_until_ready(dq_network_forward(state[:1], pslab, wslab))
    assert q1.shape == (1, ACTION_SIZE)
    assert jnp.allclose(q1, ref_matched[:1], atol=2e-3, rtol=2e-3), \
        "B=1 mismatch vs precision-matched reference"

    print("KERNEL_OK")
</pallas_src>

<mosaic_0001>
module attributes {stable_mosaic.version = 11 : i64} {
  func.func @dqn_mlp_kernel(%arg0: i32, %arg1: memref<256x128xf32, #tpu.memory_space<vmem>>, %arg2: memref<8x128xf32, #tpu.memory_space<vmem>>, %arg3: memref<384x128xbf16, #tpu.memory_space<vmem>>, %arg4: memref<256x128xbf16, #tpu.memory_space<vmem>>) attributes {dimension_semantics = [#tpu.dimension_semantics<parallel>], iteration_bounds = array<i64: 1>, scalar_prefetch = 0 : i64, scratch_operands = 0 : i64, tpu.core_type = #tpu.core_type<tc>, window_params = [{transform_indices = @transform_0, window_bounds = array<i64: 256, 128>}, {pipeline_mode = #tpu.pipeline_mode<synchronous>, transform_indices = @transform_1, window_bounds = array<i64: 8, 128>}, {pipeline_mode = #tpu.pipeline_mode<synchronous>, transform_indices = @transform_2, window_bounds = array<i64: 384, 128>}, {transform_indices = @transform_3, window_bounds = array<i64: 256, 128>}]} {
    %c0 = arith.constant 0 : index
    %c0_0 = arith.constant 0 : index
    %0 = vector.load %arg1[%c0, %c0_0] : memref<256x128xf32, #tpu.memory_space<vmem>>, vector<256x128xf32>
    %1 = arith.truncf %0 : vector<256x128xf32> to vector<256x128xbf16>
    %c0_1 = arith.constant 0 : index
    %c0_2 = arith.constant 0 : index
    %2 = vector.load %arg2[%c0_1, %c0_2] : memref<8x128xf32, #tpu.memory_space<vmem>>, vector<8x128xf32>
    %3 = vector.extract_strided_slice %2 {offsets = [0, 0], sizes = [1, 128], strides = [1, 1]} : vector<8x128xf32> to vector<1x128xf32>
    %4 = vector.extract_strided_slice %2 {offsets = [1, 0], sizes = [1, 128], strides = [1, 1]} : vector<8x128xf32> to vector<1x128xf32>
    %5 = vector.extract_strided_slice %2 {offsets = [2, 0], sizes = [1, 128], strides = [1, 1]} : vector<8x128xf32> to vector<1x128xf32>
    %c0_3 = arith.constant 0 : index
    %c0_4 = arith.constant 0 : index
    %6 = vector.load %arg3[%c0_3, %c0_4] : memref<384x128xbf16, #tpu.memory_space<vmem>>, vector<128x128xbf16>
    %c128 = arith.constant 128 : index
    %c0_5 = arith.constant 0 : index
    %7 = vector.load %arg3[%c128, %c0_5] : memref<384x128xbf16, #tpu.memory_space<vmem>>, vector<128x128xbf16>
    %c256 = arith.constant 256 : index
    %c0_6 = arith.constant 0 : index
    %8 = vector.load %arg3[%c256, %c0_6] : memref<384x128xbf16, #tpu.memory_space<vmem>>, vector<128x128xbf16>
    %cst = arith.constant dense<0.000000e+00> : vector<256x128xf32>
    %9 = tpu.matmul %1, %6, %cst {dimension_numbers = #tpu.dot_dimension_numbers<[1], [0], [0], [1], [0, 0, 1, 1], [], []>} : vector<256x128xbf16>, vector<128x128xbf16>, vector<256x128xf32> -> vector<256x128xf32>
    %10 = vector.broadcast %3 : vector<1x128xf32> to vector<256x128xf32>
    %11 = arith.addf %9, %10 : vector<256x128xf32>
    %cst_7 = arith.constant 0.000000e+00 : f32
    %12 = vector.broadcast %cst_7 : f32 to vector<256x128xf32>
    %13 = arith.maximumf %11, %12 : vector<256x128xf32>
    %14 = arith.truncf %13 : vector<256x128xf32> to vector<256x128xbf16>
    %cst_8 = arith.constant dense<0.000000e+00> : vector<256x128xf32>
    %15 = tpu.matmul %14, %7, %cst_8 {dimension_numbers = #tpu.dot_dimension_numbers<[1], [0], [0], [1], [0, 0, 1, 1], [], []>} : vector<256x128xbf16>, vector<128x128xbf16>, vector<256x128xf32> -> vector<256x128xf32>
    %16 = vector.broadcast %4 : vector<1x128xf32> to vector<256x128xf32>
    %17 = arith.addf %15, %16 : vector<256x128xf32>
    %cst_9 = arith.constant 0.000000e+00 : f32
    %18 = vector.broadcast %cst_9 : f32 to vector<256x128xf32>
    %19 = arith.maximumf %17, %18 : vector<256x128xf32>
    %20 = arith.truncf %19 : vector<256x128xf32> to vector<256x128xbf16>
    %cst_10 = arith.constant dense<0.000000e+00> : vector<256x128xf32>
    %21 = tpu.matmul %20, %8, %cst_10 {dimension_numbers = #tpu.dot_dimension_numbers<[1], [0], [0], [1], [0, 0, 1, 1], [], []>} : vector<256x128xbf16>, vector<128x128xbf16>, vector<256x128xf32> -> vector<256x128xf32>
    %22 = vector.broadcast %5 : vector<1x128xf32> to vector<256x128xf32>
    %23 = arith.addf %21, %22 : vector<256x128xf32>
    %24 = arith.truncf %23 : vector<256x128xf32> to vector<256x128xbf16>
    %c0_11 = arith.constant 0 : index
    %c0_12 = arith.constant 0 : index
    %25 = vector.load %arg4[%c0_11, %c0_12] : memref<256x128xbf16, #tpu.memory_space<vmem>>, vector<256x128xbf16>
    tpu.vector_store %arg4[%c0_11, %c0_12], %24 {strides = array<i32>} : memref<256x128xbf16, #tpu.memory_space<vmem>>, vector<256x128xbf16>,
    return
  }
  func.func @transform_0(%arg0: i32) -> (i32, i32) {
    %c0_i32 = arith.constant 0 : i32
    %c0_i32_0 = arith.constant 0 : i32
    return %arg0, %c0_i32 : i32, i32
  }
  func.func @transform_1(%arg0: i32) -> (i32, i32) {
    %c0_i32 = arith.constant 0 : i32
    %c0_i32_0 = arith.constant 0 : i32
    %c0_i32_1 = arith.constant 0 : i32
    return %c0_i32, %c0_i32_0 : i32, i32
  }
  func.func @transform_2(%arg0: i32) -> (i32, i32) {
    %c0_i32 = arith.constant 0 : i32
    %c0_i32_0 = arith.constant 0 : i32
    %c0_i32_1 = arith.constant 0 : i32
    return %c0_i32, %c0_i32_0 : i32, i32
  }
  func.func @transform_3(%arg0: i32) -> (i32, i32) {
    %c0_i32 = arith.constant 0 : i32
    %c0_i32_0 = arith.constant 0 : i32
    return %arg0, %c0_i32 : i32, i32
  }
}

</mosaic_0001>

<llo_original>
// kernel: tpu_custom_call.1
$region0: #{tpu_custom_call.1}
  #allocation0 [shape = 'u32[]', space=smem, size = 0x4, offset = 0x4, fixed_abs, tag = 'smem constant byte address 0x4 - core index']
  #allocation1 [shape = 'u32[72,128]{1,0:T(1,128)}', space=vmem, size = 0x9000, scoped, tag = 'internal scratch']
  %s0 = inlined_call_operand.hbm [shape: f32[256,128], index: 0, kind: input, shape index: {}]
  %s1 = inlined_call_operand.hbm [shape: f32[8,128], index: 1, kind: input, shape index: {}]
  %s2 = inlined_call_operand.hbm [shape: bf16[384,128], index: 2, kind: input, shape index: {}]
  %s3 = inlined_call_operand.hbm [shape: bf16[256,128], index: 3, kind: output, shape index: {}]
  %s4 = sld [smem:[#allocation0]]
  $region34: #{tpu_custom_call.1} parent=0
    _
  %s6 = ssub.s32 1, %s4
  %s7 = scalar_select 0, %s6, %s4
  $region1: #{tpu_custom_call.1} parent=0
    #allocation2 [shape = 'u8[131072]{0}', space=vmem, size = 0x20000, scoped, tag = 'input window, operand 0, single buffered']
    #allocation3 [shape = 's32[1]{0}', space=sflag, size = 0x4, scoped, tag = 'scoped memory for tpu_custom_call.1']
    #allocation4 [shape = 's32[1]{0}', space=sflag, size = 0x4, scoped, tag = 'scoped memory for tpu_custom_call.1']
    #allocation5 [shape = 'u8[4096]{0}', space=vmem, size = 0x1000, scoped, tag = 'input window, operand 1, single buffered']
    #allocation6 [shape = 's32[1]{0}', space=sflag, size = 0x4, scoped, tag = 'scoped memory for tpu_custom_call.1']
    #allocation7 [shape = 'u8[98304]{0}', space=vmem, size = 0x18000, scoped, tag = 'input window, operand 2, single buffered']
    #allocation8 [shape = 'u8[65536]{0}', space=vmem, size = 0x10000, scoped, tag = 'output window, operand 0, single buffered']
    %8 = vsyncpa [#allocation3], 0
    %9 = vsyncpa [#allocation6], 0
    %10 = vsyncpa [#allocation4], 0
    // Predicated region
    $region2: #{tpu_custom_call.1} parent=1 // pred_check
      _
    $region3: #{tpu_custom_call.1} parent=1 // pred_check_branch
      %12 = sbr.rel (0) target = $region5
    $region4: #{tpu_custom_call.1} parent=1 // pred_region
      %14 = vsyncadd [#allocation3], 0
      %s15 = sshll.u32 %s0, 4
      %s16 = int_to_ptr.hbm [resolvable:$true] %s15
      %s17 = sshll.u32 [#allocation2], 4
      %s18 = int_to_ptr.vmem [resolvable:$true] %s17
      %23 = dma.hbm_to_vmem [thread:$0]  %s16, 4096, %s18, [#allocation3], 128, 128, 8
    $region5: #{tpu_custom_call.1} parent=1 // pred_fallthru
      _
    // Predicated region
    $region6: #{tpu_custom_call.1} parent=1 // pred_check
      _
    $region7: #{tpu_custom_call.1} parent=1 // pred_check_branch
      %25 = sbr.rel (0) target = $region9
    $region8: #{tpu_custom_call.1} parent=1 // pred_region
      %27 = vsyncadd [#allocation6], 0
      %s29 = sshll.u32 %s1, 4
      %s30 = int_to_ptr.hbm [resolvable:$true] %s29
      %s31 = sshll.u32 [#allocation5], 4
      %s32 = int_to_ptr.vmem [resolvable:$true] %s31
      %34 = dma.hbm_to_vmem [thread:$0]  %s30, 128, %s32, [#allocation6]
    $region9: #{tpu_custom_call.1} parent=1 // pred_fallthru
      _
    // Predicated region
    $region10: #{tpu_custom_call.1} parent=1 // pred_check
      _
    $region11: #{tpu_custom_call.1} parent=1 // pred_check_branch
      %36 = sbr.rel (0) target = $region13
    $region12: #{tpu_custom_call.1} parent=1 // pred_region
      %38 = vsyncadd [#allocation6], 0
      %s39 = sshll.u32 %s2, 4
      %s40 = int_to_ptr.hbm [resolvable:$true] %s39
      %s41 = sshll.u32 [#allocation7], 4
      %s42 = int_to_ptr.vmem [resolvable:$true] %s41
      %47 = dma.hbm_to_vmem [thread:$0]  %s40, 3072, %s42, [#allocation6], 64, 64, 4
    $region13: #{tpu_custom_call.1} parent=1 // pred_fallthru
      _
    // Predicated region
    $region14: #{tpu_custom_call.1} parent=1 // pred_check
      _
    $region15: #{tpu_custom_call.1} parent=1 // pred_check_branch
      %49 = sbr.rel (0) target = $region17
    $region16: #{tpu_custom_call.1} parent=1 // pred_region
      %51 = dma.done [#allocation3], 4096
    $region17: #{tpu_custom_call.1} parent=1 // pred_fallthru
      _
    // Predicated region
    $region18: #{tpu_custom_call.1} parent=1 // pred_check
      _
    $region19: #{tpu_custom_call.1} parent=1 // pred_check_branch
      %53 = sbr.rel (0) target = $region21
    $region20: #{tpu_custom_call.1} parent=1 // pred_region
      %55 = dma.done [#allocation6], 128
    $region21: #{tpu_custom_call.1} parent=1 // pred_fallthru
      _
    // Predicated region
    $region22: #{tpu_custom_call.1} parent=1 // pred_check
      _
    $region23: #{tpu_custom_call.1} parent=1 // pred_check_branch
      %57 = sbr.rel (0) target = $region25
    $region24: #{tpu_custom_call.1} parent=1 // pred_region
      %59 = dma.done [#allocation6], 3072
    $region25: #{tpu_custom_call.1} parent=1 // pred_fallthru
      _
    %v60 = vld [vmem:[#allocation2] sm:$0xff]
    %v61 = vld [vmem:[#allocation2 + $0x8] sm:$0xff]
    %v62 = vld [vmem:[#allocation2 + $0x10] sm:$0xff]
    %v63 = vld [vmem:[#allocation2 + $0x18] sm:$0xff]
    %v64 = vld [vmem:[#allocation2 + $0x20] sm:$0xff]
    %v65 = vld [vmem:[#allocation2 + $0x28] sm:$0xff]
    %v66 = vld [vmem:[#allocation2 + $0x30] sm:$0xff]
    %v67 = vld [vmem:[#allocation2 + $0x38] sm:$0xff]
    %v68 = vld [vmem:[#allocation2 + $0x40] sm:$0xff]
    %v69 = vld [vmem:[#allocation2 + $0x48] sm:$0xff]
    %v70 = vld [vmem:[#allocation2 + $0x50] sm:$0xff]
    %v71 = vld [vmem:[#allocation2 + $0x58] sm:$0xff]
    %v72 = vld [vmem:[#allocation2 + $0x60] sm:$0xff]
    %v73 = vld [vmem:[#allocation2 + $0x68] sm:$0xff]
    %v74 = vld [vmem:[#allocation2 + $0x70] sm:$0xff]
    %v75 = vld [vmem:[#allocation2 + $0x78] sm:$0xff]
    %v76 = vld [vmem:[#allocation2 + $0x80] sm:$0xff]
    %v77 = vld [vmem:[#allocation2 + $0x88] sm:$0xff]
    %v78 = vld [vmem:[#allocation2 + $0x90] sm:$0xff]
    %v79 = vld [vmem:[#allocation2 + $0x98] sm:$0xff]
    %v80 = vld [vmem:[#allocation2 + $0xa0] sm:$0xff]
    %v81 = vld [vmem:[#allocation2 + $0xa8] sm:$0xff]
    %v82 = vld [vmem:[#allocation2 + $0xb0] sm:$0xff]
    %v83 = vld [vmem:[#allocation2 + $0xb8] sm:$0xff]
    %v84 = vld [vmem:[#allocation2 + $0xc0] sm:$0xff]
    %v85 = vld [vmem:[#allocation2 + $0xc8] sm:$0xff]
    %v86 = vld [vmem:[#allocation2 + $0xd0] sm:$0xff]
    %v87 = vld [vmem:[#allocation2 + $0xd8] sm:$0xff]
    %v88 = vld [vmem:[#allocation2 + $0xe0] sm:$0xff]
    %v89 = vld [vmem:[#allocation2 + $0xe8] sm:$0xff]
    %v90 = vld [vmem:[#allocation2 + $0xf0] sm:$0xff]
    %v91 = vld [vmem:[#allocation2 + $0xf8] sm:$0xff]
    %v92 = vpack.c.bf16 %v61, %v60
    %v93 = vpack.c.bf16 %v63, %v62
    %v94 = vpack.c.bf16 %v65, %v64
    %v95 = vpack.c.bf16 %v67, %v66
    %v96 = vpack.c.bf16 %v69, %v68
    %v97 = vpack.c.bf16 %v71, %v70
    %v98 = vpack.c.bf16 %v73, %v72
    %v99 = vpack.c.bf16 %v75, %v74
    %v100 = vpack.c.bf16 %v77, %v76
    %v101 = vpack.c.bf16 %v79, %v78
    %v102 = vpack.c.bf16 %v81, %v80
    %v103 = vpack.c.bf16 %v83, %v82
    %v104 = vpack.c.bf16 %v85, %v84
    %v105 = vpack.c.bf16 %v87, %v86
    %v106 = vpack.c.bf16 %v89, %v88
    %v107 = vpack.c.bf16 %v91, %v90
    %v108 = vld [vmem:[#allocation5] sm:$0xff]
    %v109 = vld [vmem:[#allocation7] sm:$0xf]
    %v110 = vld [vmem:[#allocation7 + $0x4] sm:$0xf]
    %v111 = vld [vmem:[#allocation7 + $0x8] sm:$0xf]
    %v112 = vld [vmem:[#allocation7 + $0xc] sm:$0xf]
    %v113 = vld [vmem:[#allocation7 + $0x10] sm:$0xf]
    %v114 = vld [vmem:[#allocation7 + $0x14] sm:$0xf]
    %v115 = vld [vmem:[#allocation7 + $0x18] sm:$0xf]
    %v116 = vld [vmem:[#allocation7 + $0x1c] sm:$0xf]
    %v117 = vld [vmem:[#allocation7 + $0x20] sm:$0xf]
    %v118 = vld [vmem:[#allocation7 + $0x24] sm:$0xf]
    %v119 = vld [vmem:[#allocation7 + $0x28] sm:$0xf]
    %v120 = vld [vmem:[#allocation7 + $0x2c] sm:$0xf]
    %v121 = vld [vmem:[#allocation7 + $0x30] sm:$0xf]
    %v122 = vld [vmem:[#allocation7 + $0x34] sm:$0xf]
    %v123 = vld [vmem:[#allocation7 + $0x38] sm:$0xf]
    %v124 = vld [vmem:[#allocation7 + $0x3c] sm:$0xf]
    %v125 = vld [vmem:[#allocation7 + $0x40] sm:$0xf]
    %v126 = vld [vmem:[#allocation7 + $0x44] sm:$0xf]
    %v127 = vld [vmem:[#allocation7 + $0x48] sm:$0xf]
    %v128 = vld [vmem:[#allocation7 + $0x4c] sm:$0xf]
    %v129 = vld [vmem:[#allocation7 + $0x50] sm:$0xf]
    %v130 = vld [vmem:[#allocation7 + $0x54] sm:$0xf]
    %v131 = vld [vmem:[#allocation7 + $0x58] sm:$0xf]
    %v132 = vld [vmem:[#allocation7 + $0x5c] sm:$0xf]
    %v133 = vld [vmem:[#allocation7 + $0x60] sm:$0xf]
    %v134 = vld [vmem:[#allocation7 + $0x64] sm:$0xf]
    %v135 = vld [vmem:[#allocation7 + $0x68] sm:$0xf]
    %v136 = vld [vmem:[#allocation7 + $0x6c] sm:$0xf]
    %v137 = vld [vmem:[#allocation7 + $0x70] sm:$0xf]
    %v138 = vld [vmem:[#allocation7 + $0x74] sm:$0xf]
    %v139 = vld [vmem:[#allocation7 + $0x78] sm:$0xf]
    %v140 = vld [vmem:[#allocation7 + $0x7c] sm:$0xf]
    %v141 = vld [vmem:[#allocation7 + $0x80] sm:$0xf]
    %v142 = vld [vmem:[#allocation7 + $0x84] sm:$0xf]
    %v143 = vld [vmem:[#allocation7 + $0x88] sm:$0xf]
    %v144 = vld [vmem:[#allocation7 + $0x8c] sm:$0xf]
    %v145 = vld [vmem:[#allocation7 + $0x90] sm:$0xf]
    %v146 = vld [vmem:[#allocation7 + $0x94] sm:$0xf]
    %v147 = vld [vmem:[#allocation7 + $0x98] sm:$0xf]
    %v148 = vld [vmem:[#allocation7 + $0x9c] sm:$0xf]
    %v149 = vld [vmem:[#allocation7 + $0xa0] sm:$0xf]
    %v150 = vld [vmem:[#allocation7 + $0xa4] sm:$0xf]
    %v151 = vld [vmem:[#allocation7 + $0xa8] sm:$0xf]
    %v152 = vld [vmem:[#allocation7 + $0xac] sm:$0xf]
    %v153 = vld [vmem:[#allocation7 + $0xb0] sm:$0xf]
    %v154 = vld [vmem:[#allocation7 + $0xb4] sm:$0xf]
    %v155 = vld [vmem:[#allocation7 + $0xb8] sm:$0xf]
    %v156 = vld [vmem:[#allocation7 + $0xbc] sm:$0xf]
    %v157 = vperm.slane %v108, 0
    %v174 = vunpack.c.l.b16 %v109
    %v175 = vunpack.c.l.b16 %v110
    %v176 = vunpack.c.l.b16 %v111
    %v177 = vunpack.c.l.b16 %v112
    %v178 = vunpack.c.l.b16 %v113
    %v179 = vunpack.c.l.b16 %v114
    %v180 = vunpack.c.l.b16 %v115
    %v181 = vunpack.c.l.b16 %v116
    %v182 = vunpack.c.l.b16 %v117
    %v183 = vunpack.c.l.b16 %v118
    %v184 = vunpack.c.l.b16 %v119
    %v185 = vunpack.c.l.b16 %v120
    %v186 = vunpack.c.l.b16 %v121
    %v187 = vunpack.c.l.b16 %v122
    %v188 = vunpack.c.l.b16 %v123
    %v189 = vunpack.c.l.b16 %v124
    %v190 = vpack.c.b16 %v175, %v174
    %v191 = vpack.c.b16 %v177, %v176
    %v192 = vpack.c.b16 %v179, %v178
    %v193 = vpack.c.b16 %v181, %v180
    %v194 = vpack.c.b16 %v183, %v182
    %v195 = vpack.c.b16 %v185, %v184
    %v196 = vpack.c.b16 %v187, %v186
    %v197 = vpack.c.b16 %v189, %v188
    %206 = vmatpush.bf16.msra.mxu0 %v197
    %207 = vmatpush.bf16.msra.mxu0 %v196
    %208 = vmatpush.bf16.msra.mxu0 %v195
    %209 = vmatpush.bf16.msra.mxu0 %v194
    %210 = vmatpush.bf16.msra.mxu0 %v193
    %211 = vmatpush.bf16.msra.mxu0 %v192
    %212 = vmatpush.bf16.msra.mxu0 %v191
    %213 = vmatpush.bf16.msra.mxu0 %v190
    %214 = vmatmul.bf16.gmra.mxu0 %v92
    %v215 = vpop.f32.mrf.mxu0
    %v216 = vadd.f32 %v157, %v215
    %v217 = vpop.f32.mrf.mxu0
    %v218 = vadd.f32 %v157, %v217
    %219 = vmatmul.bf16.gmra.mxu0 %v93
    %v220 = vpop.f32.mrf.mxu0
    %v221 = vadd.f32 %v157, %v220
    %v222 = vpop.f32.mrf.mxu0
    %v223 = vadd.f32 %v157, %v222
    %224 = vmatmul.bf16.gmra.mxu0 %v94
    %v225 = vpop.f32.mrf.mxu0
    %v226 = vadd.f32 %v157, %v225
    %v227 = vpop.f32.mrf.mxu0
    %v228 = vadd.f32 %v157, %v227
    %229 = vmatmul.bf16.gmra.mxu0 %v95
    %v230 = vpop.f32.mrf.mxu0
    %v231 = vadd.f32 %v157, %v230
    %v232 = vpop.f32.mrf.mxu0
    %v233 = vadd.f32 %v157, %v232
    %234 = vmatmul.bf16.gmra.mxu0 %v96
    %v235 = vpop.f32.mrf.mxu0
    %v236 = vadd.f32 %v157, %v235
    %v237 = vpop.f32.mrf.mxu0
    %v238 = vadd.f32 %v157, %v237
    %239 = vmatmul.bf16.gmra.mxu0 %v97
    %v240 = vpop.f32.mrf.mxu0
    %v241 = vadd.f32 %v157, %v240
    %v242 = vpop.f32.mrf.mxu0
    %v243 = vadd.f32 %v157, %v242
    %244 = vmatmul.bf16.gmra.mxu0 %v98
    %v245 = vpop.f32.mrf.mxu0
    %v246 = vadd.f32 %v157, %v245
    %v247 = vpop.f32.mrf.mxu0
    %v248 = vadd.f32 %v157, %v247
    %249 = vmatmul.bf16.gmra.mxu0 %v99
    %v250 = vpop.f32.mrf.mxu0
    %v251 = vadd.f32 %v157, %v250
    %v252 = vpop.f32.mrf.mxu0
    %v253 = vadd.f32 %v157, %v252
    %254 = vmatmul.bf16.gmra.mxu0 %v100
    %v255 = vpop.f32.mrf.mxu0
    %v256 = vadd.f32 %v157, %v255
    %v257 = vpop.f32.mrf.mxu0
    %v258 = vadd.f32 %v157, %v257
    %259 = vmatmul.bf16.gmra.mxu0 %v101
    %v260 = vpop.f32.mrf.mxu0
    %v261 = vadd.f32 %v157, %v260
    %v262 = vpop.f32.mrf.mxu0
    %v263 = vadd.f32 %v157, %v262
    %264 = vmatmul.bf16.gmra.mxu0 %v102
    %v265 = vpop.f32.mrf.mxu0
    %v266 = vadd.f32 %v157, %v265
    %v267 = vpop.f32.mrf.mxu0
    %v268 = vadd.f32 %v157, %v267
    %269 = vmatmul.bf16.gmra.mxu0 %v103
    %v270 = vpop.f32.mrf.mxu0
    %v271 = vadd.f32 %v157, %v270
    %v272 = vpop.f32.mrf.mxu0
    %v273 = vadd.f32 %v157, %v272
    %274 = vmatmul.bf16.gmra.mxu0 %v104
    %v275 = vpop.f32.mrf.mxu0
    %v276 = vadd.f32 %v157, %v275
    %v277 = vpop.f32.mrf.mxu0
    %v278 = vadd.f32 %v157, %v277
    %279 = vmatmul.bf16.gmra.mxu0 %v105
    %v280 = vpop.f32.mrf.mxu0
    %v281 = vadd.f32 %v157, %v280
    %v282 = vpop.f32.mrf.mxu0
    %v283 = vadd.f32 %v157, %v282
    %284 = vmatmul.bf16.gmra.mxu0 %v106
    %v285 = vpop.f32.mrf.mxu0
    %v286 = vadd.f32 %v157, %v285
    %v287 = vpop.f32.mrf.mxu0
    %v288 = vadd.f32 %v157, %v287
    %289 = vmatmul.bf16.gmra.mxu0 %v107
    %v290 = vpop.f32.mrf.mxu0
    %v291 = vadd.f32 %v157, %v290
    %v292 = vpop.f32.mrf.mxu0
    %v293 = vadd.f32 %v157, %v292
    %294 = vdwg.mxu0
    %v295 = vmax.f32 %v216, 0.0
    %v296 = vmax.f32 %v218, 0.0
    %v297 = vmax.f32 %v221, 0.0
    %v298 = vmax.f32 %v223, 0.0
    %v299 = vmax.f32 %v226, 0.0
    %v300 = vmax.f32 %v228, 0.0
    %v301 = vmax.f32 %v231, 0.0
    %v302 = vmax.f32 %v233, 0.0
    %v303 = vmax.f32 %v236, 0.0
    %v304 = vmax.f32 %v238, 0.0
    %v305 = vmax.f32 %v241, 0.0
    %v306 = vmax.f32 %v243, 0.0
    %v307 = vmax.f32 %v246, 0.0
    %v308 = vmax.f32 %v248, 0.0
    %v309 = vmax.f32 %v251, 0.0
    %v310 = vmax.f32 %v253, 0.0
    %v311 = vmax.f32 %v256, 0.0
    %v312 = vmax.f32 %v258, 0.0
    %v313 = vmax.f32 %v261, 0.0
    %v314 = vmax.f32 %v263, 0.0
    %v315 = vmax.f32 %v266, 0.0
    %v316 = vmax.f32 %v268, 0.0
    %v317 = vmax.f32 %v271, 0.0
    %v318 = vmax.f32 %v273, 0.0
    %v319 = vmax.f32 %v276, 0.0
    %v320 = vmax.f32 %v278, 0.0
    %v321 = vmax.f32 %v281, 0.0
    %v322 = vmax.f32 %v283, 0.0
    %v323 = vmax.f32 %v286, 0.0
    %v324 = vmax.f32 %v288, 0.0
    %v325 = vmax.f32 %v291, 0.0
    %v326 = vmax.f32 %v293, 0.0
    %v327 = vpack.c.bf16 %v296, %v295
    %v328 = vpack.c.bf16 %v298, %v297
    %v329 = vpack.c.bf16 %v300, %v299
    %v330 = vpack.c.bf16 %v302, %v301
    %v331 = vpack.c.bf16 %v304, %v303
    %v332 = vpack.c.bf16 %v306, %v305
    %v333 = vpack.c.bf16 %v308, %v307
    %v334 = vpack.c.bf16 %v310, %v309
    %v335 = vpack.c.bf16 %v312, %v311
    %v336 = vpack.c.bf16 %v314, %v313
    %v337 = vpack.c.bf16 %v316, %v315
    %v338 = vpack.c.bf16 %v318, %v317
    %v339 = vpack.c.bf16 %v320, %v319
    %v340 = vpack.c.bf16 %v322, %v321
    %v341 = vpack.c.bf16 %v324, %v323
    %v342 = vpack.c.bf16 %v326, %v325
    %v343 = vperm.slane %v108, 1
    %v360 = vunpack.c.l.b16 %v125
    %v361 = vunpack.c.l.b16 %v126
    %v362 = vunpack.c.l.b16 %v127
    %v363 = vunpack.c.l.b16 %v128
    %v364 = vunpack.c.l.b16 %v129
    %v365 = vunpack.c.l.b16 %v130
    %v366 = vunpack.c.l.b16 %v131
    %v367 = vunpack.c.l.b16 %v132
    %v368 = vunpack.c.l.b16 %v133
    %v369 = vunpack.c.l.b16 %v134
    %v370 = vunpack.c.l.b16 %v135
    %v371 = vunpack.c.l.b16 %v136
    %v372 = vunpack.c.l.b16 %v137
    %v373 = vunpack.c.l.b16 %v138
    %v374 = vunpack.c.l.b16 %v139
    %v375 = vunpack.c.l.b16 %v140
    %v376 = vpack.c.b16 %v361, %v360
    %v377 = vpack.c.b16 %v363, %v362
    %v378 = vpack.c.b16 %v365, %v364
    %v379 = vpack.c.b16 %v367, %v366
    %v380 = vpack.c.b16 %v369, %v368
    %v381 = vpack.c.b16 %v371, %v370
    %v382 = vpack.c.b16 %v373, %v372
    %v383 = vpack.c.b16 %v375, %v374
    %392 = vmatpush.bf16.msra.mxu0 %v383
    %393 = vmatpush.bf16.msra.mxu0 %v382
    %394 = vmatpush.bf16.msra.mxu0 %v381
    %395 = vmatpush.bf16.msra.mxu0 %v380
    %396 = vmatpush.bf16.msra.mxu0 %v379
    %397 = vmatpush.bf16.msra.mxu0 %v378
    %398 = vmatpush.bf16.msra.mxu0 %v377
    %399 = vmatpush.bf16.msra.mxu0 %v376
    %400 = vmatmul.bf16.gmra.mxu0 %v327
    %v401 = vpop.f32.mrf.mxu0
    %v402 = vadd.f32 %v343, %v401
    %v403 = vpop.f32.mrf.mxu0
    %v404 = vadd.f32 %v343, %v403
    %405 = vmatmul.bf16.gmra.mxu0 %v328
    %v406 = vpop.f32.mrf.mxu0
    %v407 = vadd.f32 %v343, %v406
    %v408 = vpop.f32.mrf.mxu0
    %v409 = vadd.f32 %v343, %v408
    %410 = vmatmul.bf16.gmra.mxu0 %v329
    %v411 = vpop.f32.mrf.mxu0
    %v412 = vadd.f32 %v343, %v411
    %v413 = vpop.f32.mrf.mxu0
    %v414 = vadd.f32 %v343, %v413
    %415 = vmatmul.bf16.gmra.mxu0 %v330
    %v416 = vpop.f32.mrf.mxu0
    %v417 = vadd.f32 %v343, %v416
    %v418 = vpop.f32.mrf.mxu0
    %v419 = vadd.f32 %v343, %v418
    %420 = vmatmul.bf16.gmra.mxu0 %v331
    %v421 = vpop.f32.mrf.mxu0
    %v422 = vadd.f32 %v343, %v421
    %v423 = vpop.f32.mrf.mxu0
    %v424 = vadd.f32 %v343, %v423
    %425 = vmatmul.bf16.gmra.mxu0 %v332
    %v426 = vpop.f32.mrf.mxu0
    %v427 = vadd.f32 %v343, %v426
    %v428 = vpop.f32.mrf.mxu0
    %v429 = vadd.f32 %v343, %v428
    %430 = vmatmul.bf16.gmra.mxu0 %v333
    %v431 = vpop.f32.mrf.mxu0
    %v432 = vadd.f32 %v343, %v431
    %v433 = vpop.f32.mrf.mxu0
    %v434 = vadd.f32 %v343, %v433
    %435 = vmatmul.bf16.gmra.mxu0 %v334
    %v436 = vpop.f32.mrf.mxu0
    %v437 = vadd.f32 %v343, %v436
    %v438 = vpop.f32.mrf.mxu0
    %v439 = vadd.f32 %v343, %v438
    %440 = vmatmul.bf16.gmra.mxu0 %v335
    %v441 = vpop.f32.mrf.mxu0
    %v442 = vadd.f32 %v343, %v441
    %v443 = vpop.f32.mrf.mxu0
    %v444 = vadd.f32 %v343, %v443
    %445 = vmatmul.bf16.gmra.mxu0 %v336
    %v446 = vpop.f32.mrf.mxu0
    %v447 = vadd.f32 %v343, %v446
    %v448 = vpop.f32.mrf.mxu0
    %v449 = vadd.f32 %v343, %v448
    %450 = vmatmul.bf16.gmra.mxu0 %v337
    %v451 = vpop.f32.mrf.mxu0
    %v452 = vadd.f32 %v343, %v451
    %v453 = vpop.f32.mrf.mxu0
    %v454 = vadd.f32 %v343, %v453
    %455 = vmatmul.bf16.gmra.mxu0 %v338
    %v456 = vpop.f32.mrf.mxu0
    %v457 = vadd.f32 %v343, %v456
    %v458 = vpop.f32.mrf.mxu0
    %v459 = vadd.f32 %v343, %v458
    %460 = vmatmul.bf16.gmra.mxu0 %v339
    %v461 = vpop.f32.mrf.mxu0
    %v462 = vadd.f32 %v343, %v461
    %v463 = vpop.f32.mrf.mxu0
    %v464 = vadd.f32 %v343, %v463
    %465 = vmatmul.bf16.gmra.mxu0 %v340
    %v466 = vpop.f32.mrf.mxu0
    %v467 = vadd.f32 %v343, %v466
    %v468 = vpop.f32.mrf.mxu0
    %v469 = vadd.f32 %v343, %v468
    %470 = vmatmul.bf16.gmra.mxu0 %v341
    %v471 = vpop.f32.mrf.mxu0
    %v472 = vadd.f32 %v343, %v471
    %v473 = vpop.f32.mrf.mxu0
    %v474 = vadd.f32 %v343, %v473
    %475 = vmatmul.bf16.gmra.mxu0 %v342
    %v476 = vpop.f32.mrf.mxu0
    %v477 = vadd.f32 %v343, %v476
    %v478 = vpop.f32.mrf.mxu0
    %v479 = vadd.f32 %v343, %v478
    %480 = vdwg.mxu0
    %v481 = vmax.f32 %v402, 0.0
    %v482 = vmax.f32 %v404, 0.0
    %v483 = vmax.f32 %v407, 0.0
    %v484 = vmax.f32 %v409, 0.0
    %v485 = vmax.f32 %v412, 0.0
    %v486 = vmax.f32 %v414, 0.0
    %v487 = vmax.f32 %v417, 0.0
    %v488 = vmax.f32 %v419, 0.0
    %v489 = vmax.f32 %v422, 0.0
    %v490 = vmax.f32 %v424, 0.0
    %v491 = vmax.f32 %v427, 0.0
    %v492 = vmax.f32 %v429, 0.0
    %v493 = vmax.f32 %v432, 0.0
    %v494 = vmax.f32 %v434, 0.0
    %v495 = vmax.f32 %v437, 0.0
    %v496 = vmax.f32 %v439, 0.0
    %v497 = vmax.f32 %v442, 0.0
    %v498 = vmax.f32 %v444, 0.0
    %v499 = vmax.f32 %v447, 0.0
    %v500 = vmax.f32 %v449, 0.0
    %v501 = vmax.f32 %v452, 0.0
    %v502 = vmax.f32 %v454, 0.0
    %v503 = vmax.f32 %v457, 0.0
    %v504 = vmax.f32 %v459, 0.0
    %v505 = vmax.f32 %v462, 0.0
    %v506 = vmax.f32 %v464, 0.0
    %v507 = vmax.f32 %v467, 0.0
    %v508 = vmax.f32 %v469, 0.0
    %v509 = vmax.f32 %v472, 0.0
    %v510 = vmax.f32 %v474, 0.0
    %v511 = vmax.f32 %v477, 0.0
    %v512 = vmax.f32 %v479, 0.0
    %v513 = vpack.c.bf16 %v482, %v481
    %v514 = vpack.c.bf16 %v484, %v483
    %v515 = vpack.c.bf16 %v486, %v485
    %v516 = vpack.c.bf16 %v488, %v487
    %v517 = vpack.c.bf16 %v490, %v489
    %v518 = vpack.c.bf16 %v492, %v491
    %v519 = vpack.c.bf16 %v494, %v493
    %v520 = vpack.c.bf16 %v496, %v495
    %v521 = vpack.c.bf16 %v498, %v497
    %v522 = vpack.c.bf16 %v500, %v499
    %v523 = vpack.c.bf16 %v502, %v501
    %v524 = vpack.c.bf16 %v504, %v503
    %v525 = vpack.c.bf16 %v506, %v505
    %v526 = vpack.c.bf16 %v508, %v507
    %v527 = vpack.c.bf16 %v510, %v509
    %v528 = vpack.c.bf16 %v512, %v511
    %v529 = vperm.slane %v108, 2
    %v546 = vunpack.c.l.b16 %v141
    %v547 = vunpack.c.l.b16 %v142
    %v548 = vunpack.c.l.b16 %v143
    %v549 = vunpack.c.l.b16 %v144
    %v550 = vunpack.c.l.b16 %v145
    %v551 = vunpack.c.l.b16 %v146
    %v552 = vunpack.c.l.b16 %v147
    %v553 = vunpack.c.l.b16 %v148
    %v554 = vunpack.c.l.b16 %v149
    %v555 = vunpack.c.l.b16 %v150
    %v556 = vunpack.c.l.b16 %v151
    %v557 = vunpack.c.l.b16 %v152
    %v558 = vunpack.c.l.b16 %v153
    %v559 = vunpack.c.l.b16 %v154
    %v560 = vunpack.c.l.b16 %v155
    %v561 = vunpack.c.l.b16 %v156
    %v562 = vpack.c.b16 %v547, %v546
    %v563 = vpack.c.b16 %v549, %v548
    %v564 = vpack.c.b16 %v551, %v550
    %v565 = vpack.c.b16 %v553, %v552
    %v566 = vpack.c.b16 %v555, %v554
    %v567 = vpack.c.b16 %v557, %v556
    %v568 = vpack.c.b16 %v559, %v558
    %v569 = vpack.c.b16 %v561, %v560
    %578 = vmatpush.bf16.msra.mxu0 %v569
    %579 = vmatpush.bf16.msra.mxu0 %v568
    %580 = vmatpush.bf16.msra.mxu0 %v567
    %581 = vmatpush.bf16.msra.mxu0 %v566
    %582 = vmatpush.bf16.msra.mxu0 %v565
    %583 = vmatpush.bf16.msra.mxu0 %v564
    %584 = vmatpush.bf16.msra.mxu0 %v563
    %585 = vmatpush.bf16.msra.mxu0 %v562
    %586 = vmatmul.bf16.gmra.mxu0 %v513
    %v587 = vpop.f32.mrf.mxu0
    %v588 = vadd.f32 %v529, %v587
    %v589 = vpop.f32.mrf.mxu0
    %v590 = vadd.f32 %v529, %v589
    %591 = vmatmul.bf16.gmra.mxu0 %v514
    %v592 = vpop.f32.mrf.mxu0
    %v593 = vadd.f32 %v529, %v592
    %v594 = vpop.f32.mrf.mxu0
    %v595 = vadd.f32 %v529, %v594
    %596 = vmatmul.bf16.gmra.mxu0 %v515
    %v597 = vpop.f32.mrf.mxu0
    %v598 = vadd.f32 %v529, %v597
    %v599 = vpop.f32.mrf.mxu0
    %v600 = vadd.f32 %v529, %v599
    %601 = vmatmul.bf16.gmra.mxu0 %v516
    %v602 = vpop.f32.mrf.mxu0
    %v603 = vadd.f32 %v529, %v602
    %v604 = vpop.f32.mrf.mxu0
    %v605 = vadd.f32 %v529, %v604
    %606 = vmatmul.bf16.gmra.mxu0 %v517
    %v607 = vpop.f32.mrf.mxu0
    %v608 = vadd.f32 %v529, %v607
    %v609 = vpop.f32.mrf.mxu0
    %v610 = vadd.f32 %v529, %v609
    %611 = vmatmul.bf16.gmra.mxu0 %v518
    %v612 = vpop.f32.mrf.mxu0
    %v613 = vadd.f32 %v529, %v612
    %v614 = vpop.f32.mrf.mxu0
    %v615 = vadd.f32 %v529, %v614
    %616 = vmatmul.bf16.gmra.mxu0 %v519
    %v617 = vpop.f32.mrf.mxu0
    %v618 = vadd.f32 %v529, %v617
    %v619 = vpop.f32.mrf.mxu0
    %v620 = vadd.f32 %v529, %v619
    %621 = vmatmul.bf16.gmra.mxu0 %v520
    %v622 = vpop.f32.mrf.mxu0
    %v623 = vadd.f32 %v529, %v622
    %v624 = vpop.f32.mrf.mxu0
    %v625 = vadd.f32 %v529, %v624
    %626 = vmatmul.bf16.gmra.mxu0 %v521
    %v627 = vpop.f32.mrf.mxu0
    %v628 = vadd.f32 %v529, %v627
    %v629 = vpop.f32.mrf.mxu0
    %v630 = vadd.f32 %v529, %v629
    %631 = vmatmul.bf16.gmra.mxu0 %v522
    %v632 = vpop.f32.mrf.mxu0
    %v633 = vadd.f32 %v529, %v632
    %v634 = vpop.f32.mrf.mxu0
    %v635 = vadd.f32 %v529, %v634
    %636 = vmatmul.bf16.gmra.mxu0 %v523
    %v637 = vpop.f32.mrf.mxu0
    %v638 = vadd.f32 %v529, %v637
    %v639 = vpop.f32.mrf.mxu0
    %v640 = vadd.f32 %v529, %v639
    %641 = vmatmul.bf16.gmra.mxu0 %v524
    %v642 = vpop.f32.mrf.mxu0
    %v643 = vadd.f32 %v529, %v642
    %v644 = vpop.f32.mrf.mxu0
    %v645 = vadd.f32 %v529, %v644
    %646 = vmatmul.bf16.gmra.mxu0 %v525
    %v647 = vpop.f32.mrf.mxu0
    %v648 = vadd.f32 %v529, %v647
    %v649 = vpop.f32.mrf.mxu0
    %v650 = vadd.f32 %v529, %v649
    %651 = vmatmul.bf16.gmra.mxu0 %v526
    %v652 = vpop.f32.mrf.mxu0
    %v653 = vadd.f32 %v529, %v652
    %v654 = vpop.f32.mrf.mxu0
    %v655 = vadd.f32 %v529, %v654
    %656 = vmatmul.bf16.gmra.mxu0 %v527
    %v657 = vpop.f32.mrf.mxu0
    %v658 = vadd.f32 %v529, %v657
    %v659 = vpop.f32.mrf.mxu0
    %v660 = vadd.f32 %v529, %v659
    %661 = vmatmul.bf16.gmra.mxu0 %v528
    %v662 = vpop.f32.mrf.mxu0
    %v663 = vadd.f32 %v529, %v662
    %v664 = vpop.f32.mrf.mxu0
    %v665 = vadd.f32 %v529, %v664
    %666 = vdwg.mxu0
    %v667 = vpack.c.bf16 %v588, %v588
    %v668 = vpack.c.bf16 %v590, %v590
    %v669 = vpack.c.bf16 %v593, %v593
    %v670 = vpack.c.bf16 %v595, %v595
    %v671 = vpack.c.bf16 %v598, %v598
    %v672 = vpack.c.bf16 %v600, %v600
    %v673 = vpack.c.bf16 %v603, %v603
    %v674 = vpack.c.bf16 %v605, %v605
    %v675 = vpack.c.bf16 %v608, %v608
    %v676 = vpack.c.bf16 %v610, %v610
    %v677 = vpack.c.bf16 %v613, %v613
    %v678 = vpack.c.bf16 %v615, %v615
    %v679 = vpack.c.bf16 %v618, %v618
    %v680 = vpack.c.bf16 %v620, %v620
    %v681 = vpack.c.bf16 %v623, %v623
    %v682 = vpack.c.bf16 %v625, %v625
    %v683 = vpack.c.bf16 %v628, %v628
    %v684 = vpack.c.bf16 %v630, %v630
    %v685 = vpack.c.bf16 %v633, %v633
    %v686 = vpack.c.bf16 %v635, %v635
    %v687 = vpack.c.bf16 %v638, %v638
    %v688 = vpack.c.bf16 %v640, %v640
    %v689 = vpack.c.bf16 %v643, %v643
    %v690 = vpack.c.bf16 %v645, %v645
    %v691 = vpack.c.bf16 %v648, %v648
    %v692 = vpack.c.bf16 %v650, %v650
    %v693 = vpack.c.bf16 %v653, %v653
    %v694 = vpack.c.bf16 %v655, %v655
    %v695 = vpack.c.bf16 %v658, %v658
    %v696 = vpack.c.bf16 %v660, %v660
    %v697 = vpack.c.bf16 %v663, %v663
    %v698 = vpack.c.bf16 %v665, %v665
    %699 = vst [vmem:[#allocation8] sm:$0xf] %v667
    %700 = vst [vmem:[#allocation8 + $0x4] sm:$0xf] %v668
    %701 = vst [vmem:[#allocation8 + $0x8] sm:$0xf] %v669
    %702 = vst [vmem:[#allocation8 + $0xc] sm:$0xf] %v670
    %703 = vst [vmem:[#allocation8 + $0x10] sm:$0xf] %v671
    %704 = vst [vmem:[#allocation8 + $0x14] sm:$0xf] %v672
    %705 = vst [vmem:[#allocation8 + $0x18] sm:$0xf] %v673
    %706 = vst [vmem:[#allocation8 + $0x1c] sm:$0xf] %v674
    %707 = vst [vmem:[#allocation8 + $0x20] sm:$0xf] %v675
    %708 = vst [vmem:[#allocation8 + $0x24] sm:$0xf] %v676
    %709 = vst [vmem:[#allocation8 + $0x28] sm:$0xf] %v677
    %710 = vst [vmem:[#allocation8 + $0x2c] sm:$0xf] %v678
    %711 = vst [vmem:[#allocation8 + $0x30] sm:$0xf] %v679
    %712 = vst [vmem:[#allocation8 + $0x34] sm:$0xf] %v680
    %713 = vst [vmem:[#allocation8 + $0x38] sm:$0xf] %v681
    %714 = vst [vmem:[#allocation8 + $0x3c] sm:$0xf] %v682
    %715 = vst [vmem:[#allocation8 + $0x40] sm:$0xf] %v683
    %716 = vst [vmem:[#allocation8 + $0x44] sm:$0xf] %v684
    %717 = vst [vmem:[#allocation8 + $0x48] sm:$0xf] %v685
    %718 = vst [vmem:[#allocation8 + $0x4c] sm:$0xf] %v686
    %719 = vst [vmem:[#allocation8 + $0x50] sm:$0xf] %v687
    %720 = vst [vmem:[#allocation8 + $0x54] sm:$0xf] %v688
    %721 = vst [vmem:[#allocation8 + $0x58] sm:$0xf] %v689
    %722 = vst [vmem:[#allocation8 + $0x5c] sm:$0xf] %v690
    %723 = vst [vmem:[#allocation8 + $0x60] sm:$0xf] %v691
    %724 = vst [vmem:[#allocation8 + $0x64] sm:$0xf] %v692
    %725 = vst [vmem:[#allocation8 + $0x68] sm:$0xf] %v693
    %726 = vst [vmem:[#allocation8 + $0x6c] sm:$0xf] %v694
    %727 = vst [vmem:[#allocation8 + $0x70] sm:$0xf] %v695
    %728 = vst [vmem:[#allocation8 + $0x74] sm:$0xf] %v696
    %729 = vst [vmem:[#allocation8 + $0x78] sm:$0xf] %v697
    %730 = vst [vmem:[#allocation8 + $0x7c] sm:$0xf] %v698
    // Predicated region
    $region26: #{tpu_custom_call.1} parent=1 // pred_check
      _
    $region27: #{tpu_custom_call.1} parent=1 // pred_check_branch
      %732 = sbr.rel (0) target = $region29
    $region28: #{tpu_custom_call.1} parent=1 // pred_region
      %734 = vsyncadd [#allocation4], 0
      %s735 = sshll.u32 [#allocation8], 4
      %s736 = int_to_ptr.vmem [resolvable:$true] %s735
      %s737 = sshll.u32 %s3, 4
      %s738 = int_to_ptr.hbm [resolvable:$true] %s737
      %743 = dma.vmem_to_hbm [thread:$0]  %s736, 2048, %s738, [#allocation4], 64, 64, 4
    $region29: #{tpu_custom_call.1} parent=1 // pred_fallthru
      _
    // Predicated region
    $region30: #{tpu_custom_call.1} parent=1 // pred_check
      _
    $region31: #{tpu_custom_call.1} parent=1 // pred_check_branch
      %745 = sbr.rel (0) target = $region33
    $region32: #{tpu_custom_call.1} parent=1 // pred_region
      %747 = dma.done [#allocation4], 2048
    $region33: #{tpu_custom_call.1} parent=1 // pred_fallthru
      _
    %748 = vsyncpa [#allocation3], 1
    %749 = vsyncpa [#allocation6], 1
    %750 = vsyncpa [#allocation4], 1

</llo_original>
